<compile_context>
chip_gen: v7x
topology: tpu7x:2x2x1
jax: 0.10.0
libtpu: 0.0.40
codegen_flags: <defaults>
</compile_context>

<pallas_src>
import functools

import jax
import jax.numpy as jnp
from jax import lax
from jax.experimental import pallas as pl
from jax.experimental.pallas import tpu as pltpu


def _round_up(x, m):
    return (x + m - 1) // m * m


def projection_head_kernel(x_ref, w1_ref, w2_ref, p_ref, o_ref):
    # packed params: row 0 = b1, 1 = b2, 2 = ln gamma, 3 = ln beta  (each (1, P))
    b1 = p_ref[0:1, :]
    b2 = p_ref[1:2, :]
    gamma = p_ref[2:3, :]
    beta = p_ref[3:4, :]

    # AdaptiveAvgPool1d(1): mean over the trailing seq axis.  Cross-lane
    # reduce on the XLU (idle slot here; kernel is HBM-bound on x), keeping the
    # MXU contraction at K = H against the original (H, P) weight.
    pooled = jnp.mean(x_ref[...], axis=-1)                            # (tb, H)

    prj = jnp.dot(pooled, w1_ref[...],
                  preferred_element_type=jnp.float32) + b1            # (tb, P)

    # Exact (erf) GELU, matching torch.nn.GELU() default.
    h = 0.5 * prj * (1.0 + lax.erf(prj * 0.7071067811865476))

    y = jnp.dot(h, w2_ref[...],
                preferred_element_type=jnp.float32) + b2              # (tb, P)

    # TODO(synk): nn.Dropout is identity in eval mode; training-mode dropout omitted.

    # Residual from pre-GELU projection.
    y = y + prj

    # LayerNorm over last dim (biased variance, eps = 1e-5).
    mean = jnp.mean(y, axis=-1, keepdims=True)
    var = jnp.mean((y - mean) ** 2, axis=-1, keepdims=True)
    normed = (y - mean) * lax.rsqrt(var + 1e-5)
    o_ref[...] = (normed * gamma + beta).astype(o_ref.dtype)


def _pick_batch_tile(B, H, S, P, block_b, max_block_b, vmem_budget):
    """Derive the batch tile from a VMEM budget (padded (8,128) tile sizes)."""
    if block_b is not None:
        tb = block_b
    else:
        s_l = _round_up(S, 128)
        p_l = _round_up(P, 128)
        h_s = _round_up(H, 8)
        # Double-buffered x tile + out tile per batch row, plus double-buffered
        # resident weights / packed params.
        row_bytes = 2 * 4 * (h_s * s_l + p_l)
        fixed = 2 * 4 * (h_s * p_l + _round_up(P, 8) * p_l + 8 * p_l)
        tb = max(8, (vmem_budget - fixed) // row_bytes)
        tb = min(tb, max_block_b)
    tb = max(8, (tb // 8) * 8)
    if B <= tb:
        if B >= 512:
            # Large single-tile batch: split so a parallel grid (>= 2 steps)
            # can feed both TensorCores on v7x.
            tb = _round_up(pl.cdiv(B, 2), 8)
        else:
            tb = B  # single whole-resident step (full-extent block is legal)
    return tb


@functools.partial(jax.jit, static_argnames=("block_b",))
def projection_head(x, w1, b1, w2, b2, gamma, beta, *, block_b=None):
    B, H, S = x.shape
    P = w1.shape[1]

    # Pack the four small parameter vectors into a single (4, P) input
    # (one DMA instead of four).
    params = jnp.stack([b1.reshape(-1), b2.reshape(-1),
                        gamma.reshape(-1), beta.reshape(-1)], axis=0)

    tb = _pick_batch_tile(B, H, S, P, block_b,
                          max_block_b=2048, vmem_budget=20 * 1024 * 1024)
    # Ragged last block is handled by Pallas (no jnp.pad copy of x in HBM).
    grid = (pl.cdiv(B, tb),)

    cost = pl.CostEstimate(
        flops=B * H * S + 2 * B * H * P + 2 * B * P * P + 10 * B * P,
        transcendentals=B * P,
        bytes_accessed=4 * (B * H * S + H * P + P * P + 4 * P + B * P),
    )

    return pl.pallas_call(
        projection_head_kernel,
        out_shape=jax.ShapeDtypeStruct((B, P), jnp.float32),
        grid=grid,
        in_specs=[
            pl.BlockSpec((tb, H, S), lambda i: (i, 0, 0)),  # x, tiled over batch
            pl.BlockSpec((H, P), lambda i: (0, 0)),         # projection weight (resident)
            pl.BlockSpec((P, P), lambda i: (0, 0)),         # fc weight (resident)
            pl.BlockSpec((4, P), lambda i: (0, 0)),         # packed b1/b2/gamma/beta
        ],
        out_specs=pl.BlockSpec((tb, P), lambda i: (i, 0)),
        compiler_params=pltpu.CompilerParams(
            dimension_semantics=("parallel",),
            vmem_limit_bytes=32 * 1024 * 1024),
        cost_estimate=cost,
    )(x, w1, w2, params)


def reference(x, w1, b1, w2, b2, gamma, beta):
    pooled = jnp.mean(x, axis=-1)
    prj = jnp.dot(pooled, w1, precision=lax.Precision.HIGHEST) + b1
    h = jax.nn.gelu(prj, approximate=False)
    y = jnp.dot(h, w2, precision=lax.Precision.HIGHEST) + b2
    y = y + prj
    mean = jnp.mean(y, axis=-1, keepdims=True)
    var = jnp.mean((y - mean) ** 2, axis=-1, keepdims=True)
    return (y - mean) * lax.rsqrt(var + 1e-5) * gamma + beta


if __name__ == "__main__":
    # config = {'hidden_size': 32, 'projection_size': 16, 'train': {'dropout': 0.1}}
    B, H, S, P = 2, 32, 8, 16

    key = jax.random.PRNGKey(0)
    kx, kw1, kb1, kw2, kb2 = jax.random.split(key, 5)

    x = jax.random.normal(kx, (B, H, S), dtype=jnp.float32)

    # Linear weights stored transposed: (in_features, out_features).
    w1 = jax.random.normal(kw1, (H, P), dtype=jnp.float32) * 0.05
    b1 = jax.random.normal(kb1, (P,), dtype=jnp.float32) * 0.05
    w2 = jax.random.normal(kw2, (P, P), dtype=jnp.float32) * 0.05
    b2 = jax.random.normal(kb2, (P,), dtype=jnp.float32) * 0.05
    gamma = jnp.ones((P,), dtype=jnp.float32)     # LayerNorm weight
    beta = jnp.zeros((P,), dtype=jnp.float32)     # LayerNorm bias

    # Small-batch path: single whole-resident grid step.
    out = jax.block_until_ready(projection_head(x, w1, b1, w2, b2, gamma, beta))
    ref = reference(x, w1, b1, w2, b2, gamma, beta)
    assert out.shape == (B, P)
    assert jnp.allclose(out, ref, atol=3e-5, rtol=1e-4), (
        f"mismatch (small B): max abs err {jnp.max(jnp.abs(out - ref))}")

    # Larger ragged batch with explicit tile: multi-step parallel grid with a
    # partial last block (no wrapper-side padding copy).
    B2 = 300
    x_big = jax.random.normal(jax.random.PRNGKey(1), (B2, H, S), dtype=jnp.float32)
    out_big = jax.block_until_ready(
        projection_head(x_big, w1, b1, w2, b2, gamma, beta, block_b=128))
    ref_big = reference(x_big, w1, b1, w2, b2, gamma, beta)
    assert out_big.shape == (B2, P)
    assert jnp.allclose(out_big, ref_big, atol=3e-5, rtol=1e-4), (
        f"mismatch (large B, tiled): max abs err {jnp.max(jnp.abs(out_big - ref_big))}")

    # Auto (VMEM-budget-derived) tile path on the same batch.
    out_auto = jax.block_until_ready(
        projection_head(x_big, w1, b1, w2, b2, gamma, beta))
    assert jnp.allclose(out_auto, ref_big, atol=3e-5, rtol=1e-4), (
        f"mismatch (large B, auto): max abs err {jnp.max(jnp.abs(out_auto - ref_big))}")

    print("KERNEL_OK")
</pallas_src>

<mosaic_0001>
module attributes {stable_mosaic.version = 11 : i64} {
  func.func @projection_head_kernel(%arg0: i32, %arg1: memref<2x32x8xf32, #tpu.memory_space<vmem>>, %arg2: memref<32x16xf32, #tpu.memory_space<vmem>>, %arg3: memref<16x16xf32, #tpu.memory_space<vmem>>, %arg4: memref<4x16xf32, #tpu.memory_space<vmem>>, %arg5: memref<2x16xf32, #tpu.memory_space<vmem>>) attributes {dimension_semantics = [#tpu.dimension_semantics<parallel>], iteration_bounds = array<i64: 1>, scalar_prefetch = 0 : i64, scratch_operands = 0 : i64, tpu.core_type = #tpu.core_type<tc>, window_params = [{transform_indices = @transform_0, window_bounds = array<i64: 2, 32, 8>}, {pipeline_mode = #tpu.pipeline_mode<synchronous>, transform_indices = @transform_1, window_bounds = array<i64: 32, 16>}, {pipeline_mode = #tpu.pipeline_mode<synchronous>, transform_indices = @transform_2, window_bounds = array<i64: 16, 16>}, {pipeline_mode = #tpu.pipeline_mode<synchronous>, transform_indices = @transform_3, window_bounds = array<i64: 4, 16>}, {transform_indices = @transform_4, window_bounds = array<i64: 2, 16>}]} {
    %c0 = arith.constant 0 : index
    %c0_0 = arith.constant 0 : index
    %0 = vector.load %arg4[%c0, %c0_0] : memref<4x16xf32, #tpu.memory_space<vmem>>, vector<1x16xf32>
    %c1 = arith.constant 1 : index
    %c0_1 = arith.constant 0 : index
    %1 = vector.load %arg4[%c1, %c0_1] : memref<4x16xf32, #tpu.memory_space<vmem>>, vector<1x16xf32>
    %c2 = arith.constant 2 : index
    %c0_2 = arith.constant 0 : index
    %2 = vector.load %arg4[%c2, %c0_2] : memref<4x16xf32, #tpu.memory_space<vmem>>, vector<1x16xf32>
    %c3 = arith.constant 3 : index
    %c0_3 = arith.constant 0 : index
    %3 = vector.load %arg4[%c3, %c0_3] : memref<4x16xf32, #tpu.memory_space<vmem>>, vector<1x16xf32>
    %c0_4 = arith.constant 0 : index
    %c0_5 = arith.constant 0 : index
    %c0_6 = arith.constant 0 : index
    %4 = vector.load %arg1[%c0_4, %c0_5, %c0_6] : memref<2x32x8xf32, #tpu.memory_space<vmem>>, vector<2x32x8xf32>
    %cst = arith.constant dense<0.000000e+00> : vector<2x32xf32>
    %5 = vector.multi_reduction <add>, %4, %cst [2] : vector<2x32x8xf32> to vector<2x32xf32>
    %cst_7 = arith.constant 8.000000e+00 : f32
    %6 = vector.broadcast %cst_7 : f32 to vector<2x32xf32>
    %7 = arith.divf %5, %6 : vector<2x32xf32>
    %c0_8 = arith.constant 0 : index
    %c0_9 = arith.constant 0 : index
    %8 = vector.load %arg2[%c0_8, %c0_9] : memref<32x16xf32, #tpu.memory_space<vmem>>, vector<32x16xf32>
    %cst_10 = arith.constant dense<0.000000e+00> : vector<2x16xf32>
    %9 = tpu.matmul %7, %8, %cst_10 {dimension_numbers = #tpu.dot_dimension_numbers<[1], [0], [0], [1], [0, 0, 1, 1], [], []>} : vector<2x32xf32>, vector<32x16xf32>, vector<2x16xf32> -> vector<2x16xf32>
    %10 = vector.broadcast %0 : vector<1x16xf32> to vector<2x16xf32>
    %11 = arith.addf %9, %10 : vector<2x16xf32>
    %cst_11 = arith.constant 5.000000e-01 : f32
    %12 = vector.broadcast %cst_11 : f32 to vector<2x16xf32>
    %13 = arith.mulf %12, %11 : vector<2x16xf32>
    %cst_12 = arith.constant 0.707106769 : f32
    %14 = vector.broadcast %cst_12 : f32 to vector<2x16xf32>
    %15 = arith.mulf %11, %14 : vector<2x16xf32>
    %16 = math.erf %15 : vector<2x16xf32>
    %cst_13 = arith.constant 1.000000e+00 : f32
    %17 = vector.broadcast %cst_13 : f32 to vector<2x16xf32>
    %18 = arith.addf %17, %16 : vector<2x16xf32>
    %19 = arith.mulf %13, %18 : vector<2x16xf32>
    %c0_14 = arith.constant 0 : index
    %c0_15 = arith.constant 0 : index
    %20 = vector.load %arg3[%c0_14, %c0_15] : memref<16x16xf32, #tpu.memory_space<vmem>>, vector<16x16xf32>
    %cst_16 = arith.constant dense<0.000000e+00> : vector<2x16xf32>
    %21 = tpu.matmul %19, %20, %cst_16 {dimension_numbers = #tpu.dot_dimension_numbers<[1], [0], [0], [1], [0, 0, 1, 1], [], []>} : vector<2x16xf32>, vector<16x16xf32>, vector<2x16xf32> -> vector<2x16xf32>
    %22 = vector.broadcast %1 : vector<1x16xf32> to vector<2x16xf32>
    %23 = arith.addf %21, %22 : vector<2x16xf32>
    %24 = arith.addf %23, %11 : vector<2x16xf32>
    %cst_17 = arith.constant dense<0.000000e+00> : vector<2xf32>
    %25 = vector.multi_reduction <add>, %24, %cst_17 [1] : vector<2x16xf32> to vector<2xf32>
    %26 = vector.shape_cast %25 : vector<2xf32> to vector<2x1xf32>
    %cst_18 = arith.constant 1.600000e+01 : f32
    %27 = vector.broadcast %cst_18 : f32 to vector<2x1xf32>
    %28 = arith.divf %26, %27 : vector<2x1xf32>
    %29 = vector.broadcast %28 : vector<2x1xf32> to vector<2x16xf32>
    %30 = arith.subf %24, %29 : vector<2x16xf32>
    %31 = arith.mulf %30, %30 : vector<2x16xf32>
    %cst_19 = arith.constant dense<0.000000e+00> : vector<2xf32>
    %32 = vector.multi_reduction <add>, %31, %cst_19 [1] : vector<2x16xf32> to vector<2xf32>
    %33 = vector.shape_cast %32 : vector<2xf32> to vector<2x1xf32>
    %cst_20 = arith.constant 1.600000e+01 : f32
    %34 = vector.broadcast %cst_20 : f32 to vector<2x1xf32>
    %35 = arith.divf %33, %34 : vector<2x1xf32>
    %36 = vector.broadcast %28 : vector<2x1xf32> to vector<2x16xf32>
    %37 = arith.subf %24, %36 : vector<2x16xf32>
    %cst_21 = arith.constant 9.99999974E-6 : f32
    %38 = vector.broadcast %cst_21 : f32 to vector<2x1xf32>
    %39 = arith.addf %35, %38 : vector<2x1xf32>
    %40 = math.rsqrt %39 : vector<2x1xf32>
    %41 = vector.broadcast %40 : vector<2x1xf32> to vector<2x16xf32>
    %42 = arith.mulf %37, %41 : vector<2x16xf32>
    %43 = vector.broadcast %2 : vector<1x16xf32> to vector<2x16xf32>
    %44 = arith.mulf %42, %43 : vector<2x16xf32>
    %45 = vector.broadcast %3 : vector<1x16xf32> to vector<2x16xf32>
    %46 = arith.addf %44, %45 : vector<2x16xf32>
    %c0_22 = arith.constant 0 : index
    %c0_23 = arith.constant 0 : index
    %47 = vector.load %arg5[%c0_22, %c0_23] : memref<2x16xf32, #tpu.memory_space<vmem>>, vector<2x16xf32>
    tpu.vector_store %arg5[%c0_22, %c0_23], %46 {strides = array<i32>} : memref<2x16xf32, #tpu.memory_space<vmem>>, vector<2x16xf32>,
    return
  }
  func.func @transform_0(%arg0: i32) -> (i32, i32, i32) {
    %c0_i32 = arith.constant 0 : i32
    %c0_i32_0 = arith.constant 0 : i32
    %c0_i32_1 = arith.constant 0 : i32
    return %arg0, %c0_i32, %c0_i32_0 : i32, i32, i32
  }
  func.func @transform_1(%arg0: i32) -> (i32, i32) {
    %c0_i32 = arith.constant 0 : i32
    %c0_i32_0 = arith.constant 0 : i32
    %c0_i32_1 = arith.constant 0 : i32
    return %c0_i32, %c0_i32_0 : i32, i32
  }
  func.func @transform_2(%arg0: i32) -> (i32, i32) {
    %c0_i32 = arith.constant 0 : i32
    %c0_i32_0 = arith.constant 0 : i32
    %c0_i32_1 = arith.constant 0 : i32
    return %c0_i32, %c0_i32_0 : i32, i32
  }
  func.func @transform_3(%arg0: i32) -> (i32, i32) {
    %c0_i32 = arith.constant 0 : i32
    %c0_i32_0 = arith.constant 0 : i32
    %c0_i32_1 = arith.constant 0 : i32
    return %c0_i32, %c0_i32_0 : i32, i32
  }
  func.func @transform_4(%arg0: i32) -> (i32, i32) {
    %c0_i32 = arith.constant 0 : i32
    %c0_i32_0 = arith.constant 0 : i32
    return %arg0, %c0_i32 : i32, i32
  }
}

</mosaic_0001>

<llo_original>
// kernel: projection_head.1
$region0: #{projection_head.1}
  #allocation0 [shape = 'u32[]', space=smem, size = 0x4, offset = 0x4, fixed_abs, tag = 'smem constant byte address 0x4 - core index']
  #allocation1 [shape = 'u32[144,128]{1,0:T(1,128)}', space=vmem, size = 0x12000, scoped, tag = 'internal scratch']
  %s0 = inlined_call_operand.vmem [shape: f32[2,32,8], index: 0, kind: input, shape index: {}]
  %s1 = inlined_call_operand.vmem [shape: f32[32,16], index: 1, kind: input, shape index: {}]
  %s2 = inlined_call_operand.vmem [shape: f32[16,16], index: 2, kind: input, shape index: {}]
  %s3 = inlined_call_operand.vmem [shape: f32[4,16], index: 3, kind: input, shape index: {}]
  %s4 = inlined_call_operand.hbm [shape: f32[2,16], index: 4, kind: output, shape index: {}]
  %s5 = sld [smem:[#allocation0]]
  $region26: #{projection_head.1} parent=0
    _
  %s7 = ssub.s32 1, %s5
  %s8 = scalar_select 0, %s7, %s5
  $region1: #{projection_head.1} parent=0
    #allocation2 [shape = 'u8[1024]{0}', space=vmem, size = 0x400, scoped, tag = 'output window, operand 0, single buffered']
    #allocation3 [shape = 's32[1]{0}', space=sflag, size = 0x4, scoped, tag = 'scoped memory for projection_head.1']
    %9 = vsyncpa [#allocation3], 0
    // Predicated region
    $region2: #{projection_head.1} parent=1 // pred_check
      _
    $region3: #{projection_head.1} parent=1 // pred_check_branch
      %11 = sbr.rel (0) target = $region5
    $region4: #{projection_head.1} parent=1 // pred_region
      _
    $region5: #{projection_head.1} parent=1 // pred_fallthru
      _
    // Predicated region
    $region6: #{projection_head.1} parent=1 // pred_check
      _
    $region7: #{projection_head.1} parent=1 // pred_check_branch
      %13 = sbr.rel (0) target = $region9
    $region8: #{projection_head.1} parent=1 // pred_region
      _
    $region9: #{projection_head.1} parent=1 // pred_fallthru
      _
    // Predicated region
    $region10: #{projection_head.1} parent=1 // pred_check
      _
    $region11: #{projection_head.1} parent=1 // pred_check_branch
      %15 = sbr.rel (0) target = $region13
    $region12: #{projection_head.1} parent=1 // pred_region
      _
    $region13: #{projection_head.1} parent=1 // pred_fallthru
      _
    // Predicated region
    $region14: #{projection_head.1} parent=1 // pred_check
      _
    $region15: #{projection_head.1} parent=1 // pred_check_branch
      %17 = sbr.rel (0) target = $region17
    $region16: #{projection_head.1} parent=1 // pred_region
      _
    $region17: #{projection_head.1} parent=1 // pred_fallthru
      _
    %v18 = vld [vmem:[%s3] sm:$0x1]
    %v19 = vld [vmem:[%s3 + $0x1] sm:$0x1]
    %v20 = vld [vmem:[%s3 + $0x2] sm:$0x1]
    %v21 = vld [vmem:[%s3 + $0x3] sm:$0x1]
    %v22 = vld [vmem:[%s0] sm:$0xff]
    %v23 = vld [vmem:[%s0 + $0x8] sm:$0xff]
    %v24 = vld [vmem:[%s0 + $0x10] sm:$0xff]
    %v25 = vld [vmem:[%s0 + $0x18] sm:$0xff]
    %v26 = vld [vmem:[%s0 + $0x20] sm:$0xff]
    %v27 = vld [vmem:[%s0 + $0x28] sm:$0xff]
    %v28 = vld [vmem:[%s0 + $0x30] sm:$0xff]
    %v29 = vld [vmem:[%s0 + $0x38] sm:$0xff]
    %vm30 = vcmask 64512
    %v31 = vsel %vm30, %v22, 0.0
    %32 = vadd.xlane.f32.xlu0 %v31
    %v33 = vpop.xlane.xlu0 %32
    %v34 = vsel %vm30, %v23, 0.0
    %35 = vadd.xlane.f32.xlu0 %v34
    %v36 = vpop.xlane.xlu0 %35
    %v37 = vsel %vm30, %v24, 0.0
    %38 = vadd.xlane.f32.xlu0 %v37
    %v39 = vpop.xlane.xlu0 %38
    %v40 = vsel %vm30, %v25, 0.0
    %41 = vadd.xlane.f32.xlu0 %v40
    %v42 = vpop.xlane.xlu0 %41
    %v43 = vsel %vm30, %v26, 0.0
    %44 = vadd.xlane.f32.xlu0 %v43
    %v45 = vpop.xlane.xlu0 %44
    %v46 = vsel %vm30, %v27, 0.0
    %47 = vadd.xlane.f32.xlu0 %v46
    %v48 = vpop.xlane.xlu0 %47
    %v49 = vsel %vm30, %v28, 0.0
    %50 = vadd.xlane.f32.xlu0 %v49
    %v51 = vpop.xlane.xlu0 %50
    %v52 = vsel %vm30, %v29, 0.0
    %53 = vadd.xlane.f32.xlu0 %v52
    %v54 = vpop.xlane.xlu0 %53
    %v55 = vrcp.pop 8.0
    %v56 = vmul.f32 %v33, %v55
    %v57 = vmul.f32 %v36, %v55
    %v58 = vmul.f32 %v39, %v55
    %v59 = vmul.f32 %v42, %v55
    %v60 = vmul.f32 %v45, %v55
    %v61 = vmul.f32 %v48, %v55
    %v62 = vmul.f32 %v51, %v55
    %v63 = vmul.f32 %v54, %v55
    %v64 = vld [vmem:[%s1] sm:$0xff]
    %v65 = vld [vmem:[%s1 + $0x8] sm:$0xff]
    %v66 = vld [vmem:[%s1 + $0x10] sm:$0xff]
    %v67 = vld [vmem:[%s1 + $0x18] sm:$0xff]
    %v68 = vlaneseq
    %v69 = vshrl.u32 %v68, 7
    %v70 = vsub.s32 0, %v69
    %v71 = vrot.slane %v18, %v70
    %v80 = vlaneseq
    %v81 = vand.u32 %v80, 127
    %v82 = vlaneseq
    %v83 = vshrl.u32 %v82, 7
    %v84 = vsub.s32 %v81, %v83
    %v85 = vrot.slane %v56, %v84
    %v86 = vadd.s32 %v81, 4294967288
    %v87 = vlaneseq
    %v88 = vshrl.u32 %v87, 7
    %v89 = vsub.s32 %v86, %v88
    %v90 = vrot.slane %v57, %v89
    %vm91 = vcmask 130112
    %v92 = vsel %vm91, %v90, %v85
    %v93 = vadd.s32 %v81, 4294967280
    %v94 = vlaneseq
    %v95 = vshrl.u32 %v94, 7
    %v96 = vsub.s32 %v93, %v95
    %v97 = vrot.slane %v58, %v96
    %vm98 = vcmask 195712
    %v99 = vsel %vm98, %v97, %v92
    %v100 = vadd.s32 %v81, 4294967272
    %v101 = vlaneseq
    %v102 = vshrl.u32 %v101, 7
    %v103 = vsub.s32 %v100, %v102
    %v104 = vrot.slane %v59, %v103
    %vm105 = vcmask 261312
    %v106 = vsel %vm105, %v104, %v99
    %v107 = vlaneseq
    %v108 = vshrl.u32 %v107, 7
    %v109 = vsub.s32 %v81, %v108
    %v110 = vrot.slane %v60, %v109
    %v111 = vlaneseq
    %v112 = vshrl.u32 %v111, 7
    %v113 = vsub.s32 %v86, %v112
    %v114 = vrot.slane %v61, %v113
    %v115 = vsel %vm91, %v114, %v110
    %v116 = vlaneseq
    %v117 = vshrl.u32 %v116, 7
    %v118 = vsub.s32 %v93, %v117
    %v119 = vrot.slane %v62, %v118
    %v120 = vsel %vm98, %v119, %v115
    %v121 = vlaneseq
    %v122 = vshrl.u32 %v121, 7
    %v123 = vsub.s32 %v100, %v122
    %v124 = vrot.slane %v63, %v123
    %v125 = vsel %vm105, %v124, %v120
    %vm126 = vcmask 1041409
    %v127 = vsel %vm126, %v125, %v106
    %vm128 = vcmask 261120
    %v129 = vsel %vm128, %v127, 0
    %131 = vmatprep.subr.mxu0 0.0
    %132 = vmatpush1.msra.mxu0 %v64
    %133 = vmatprep.subr.mxu0 0.0
    %134 = vmatpush1.msra.mxu0 %v65
    %135 = vmatprep.subr.mxu0 0.0
    %136 = vmatpush1.msra.mxu0 %v66
    %137 = vmatprep.subr.mxu0 0.0
    %138 = vmatpush1.msra.mxu0 %v67
    %139 = vmatprep.subr.mxu0 0.0
    %140 = vmatpush1.msra.mxu0 0.0
    %141 = vmatprep.subr.mxu0 0.0
    %142 = vmatpush1.msra.mxu0 0.0
    %143 = vmatprep.subr.mxu0 0.0
    %144 = vmatpush1.msra.mxu0 0.0
    %145 = vmatprep.subr.mxu0 0.0
    %146 = vmatpush1.msra.mxu0 0.0
    %147 = vmatprep.subr.mxu0 0.0
    %148 = vmatpush1.msra.mxu0 0.0
    %149 = vmatprep.subr.mxu0 0.0
    %150 = vmatpush1.msra.mxu0 0.0
    %151 = vmatprep.subr.mxu0 0.0
    %152 = vmatpush1.msra.mxu0 0.0
    %153 = vmatprep.subr.mxu0 0.0
    %154 = vmatpush1.msra.mxu0 0.0
    %155 = vmatprep.subr.mxu0 0.0
    %156 = vmatpush1.msra.mxu0 0.0
    %157 = vmatprep.subr.mxu0 0.0
    %158 = vmatpush1.msra.mxu0 0.0
    %159 = vmatprep.subr.mxu0 0.0
    %160 = vmatpush1.msra.mxu0 0.0
    %161 = vmatprep.subr.mxu0 0.0
    %162 = vmatpush1.msra.mxu0 0.0
    %163 = vmatprep.subr.mxu0 0.0
    %164 = vmatpush1.msra.mxu0 0.0
    %165 = vmatprep.subr.mxu0 0.0
    %166 = vmatpush1.msra.mxu0 0.0
    %167 = vmatprep.subr.mxu0 0.0
    %168 = vmatpush1.msra.mxu0 0.0
    %169 = vmatprep.subr.mxu0 0.0
    %170 = vmatpush1.msra.mxu0 0.0
    %171 = vmatprep.subr.mxu0 0.0
    %172 = vmatpush1.msra.mxu0 0.0
    %173 = vmatprep.subr.mxu0 0.0
    %174 = vmatpush1.msra.mxu0 0.0
    %175 = vmatprep.subr.mxu0 0.0
    %176 = vmatpush1.msra.mxu0 0.0
    %177 = vmatprep.subr.mxu0 0.0
    %178 = vmatpush1.msra.mxu0 0.0
    %179 = vmatprep.subr.mxu0 0.0
    %180 = vmatpush1.msra.mxu0 0.0
    %181 = vmatprep.subr.mxu0 0.0
    %182 = vmatpush1.msra.mxu0 0.0
    %183 = vmatprep.subr.mxu0 0.0
    %184 = vmatpush1.msra.mxu0 0.0
    %185 = vmatprep.subr.mxu0 0.0
    %186 = vmatpush1.msra.mxu0 0.0
    %187 = vmatprep.subr.mxu0 0.0
    %188 = vmatpush1.msra.mxu0 0.0
    %189 = vmatprep.subr.mxu0 0.0
    %190 = vmatpush1.msra.mxu0 0.0
    %191 = vmatprep.subr.mxu0 0.0
    %192 = vmatpush1.msra.mxu0 0.0
    %193 = vmatprep.subr.mxu0 0.0
    %194 = vmatpush1.msra.mxu0 0.0
    %195 = vmatprep.mubr.f32.mxu0 0.0
    %196 = vmatmul.mubr.f32.gmra.mrb[0].mxu0 %v129
    %v197 = vpop.f32.mrb[0].mxu0
    %v198 = vadd.f32 %v71, %v197
    %v199 = vpop.f32.mrb[0].mxu0
    %200 = vdwg.mxu0
    %v201 = vmul.f32 %v198, 0.5
    %v202 = vmul.f32 %v198, 0.70710677
    %v203 = verf.f32.pop %v202
    %v204 = vadd.f32 %v203, 1.0
    %v205 = vmul.f32 %v201, %v204
    %v206 = vld [vmem:[%s2] sm:$0xff]
    %v207 = vld [vmem:[%s2 + $0x8] sm:$0xff]
    %v208 = vlaneseq
    %v209 = vshrl.u32 %v208, 7
    %v210 = vsub.s32 0, %v209
    %v211 = vrot.slane %v19, %v210
    %vm212 = vcmask 130048
    %v214 = vsel %vm212, %v205, 0
    %216 = vmatprep.subr.mxu0 0.0
    %217 = vmatpush1.msra.mxu0 %v206
    %218 = vmatprep.subr.mxu0 0.0
    %219 = vmatpush1.msra.mxu0 %v207
    %220 = vmatprep.subr.mxu0 0.0
    %221 = vmatpush1.msra.mxu0 0.0
    %222 = vmatprep.subr.mxu0 0.0
    %223 = vmatpush1.msra.mxu0 0.0
    %224 = vmatprep.subr.mxu0 0.0
    %225 = vmatpush1.msra.mxu0 0.0
    %226 = vmatprep.subr.mxu0 0.0
    %227 = vmatpush1.msra.mxu0 0.0
    %228 = vmatprep.subr.mxu0 0.0
    %229 = vmatpush1.msra.mxu0 0.0
    %230 = vmatprep.subr.mxu0 0.0
    %231 = vmatpush1.msra.mxu0 0.0
    %232 = vmatprep.subr.mxu0 0.0
    %233 = vmatpush1.msra.mxu0 0.0
    %234 = vmatprep.subr.mxu0 0.0
    %235 = vmatpush1.msra.mxu0 0.0
    %236 = vmatprep.subr.mxu0 0.0
    %237 = vmatpush1.msra.mxu0 0.0
    %238 = vmatprep.subr.mxu0 0.0
    %239 = vmatpush1.msra.mxu0 0.0
    %240 = vmatprep.subr.mxu0 0.0
    %241 = vmatpush1.msra.mxu0 0.0
    %242 = vmatprep.subr.mxu0 0.0
    %243 = vmatpush1.msra.mxu0 0.0
    %244 = vmatprep.subr.mxu0 0.0
    %245 = vmatpush1.msra.mxu0 0.0
    %246 = vmatprep.subr.mxu0 0.0
    %247 = vmatpush1.msra.mxu0 0.0
    %248 = vmatprep.subr.mxu0 0.0
    %249 = vmatpush1.msra.mxu0 0.0
    %250 = vmatprep.subr.mxu0 0.0
    %251 = vmatpush1.msra.mxu0 0.0
    %252 = vmatprep.subr.mxu0 0.0
    %253 = vmatpush1.msra.mxu0 0.0
    %254 = vmatprep.subr.mxu0 0.0
    %255 = vmatpush1.msra.mxu0 0.0
    %256 = vmatprep.subr.mxu0 0.0
    %257 = vmatpush1.msra.mxu0 0.0
    %258 = vmatprep.subr.mxu0 0.0
    %259 = vmatpush1.msra.mxu0 0.0
    %260 = vmatprep.subr.mxu0 0.0
    %261 = vmatpush1.msra.mxu0 0.0
    %262 = vmatprep.subr.mxu0 0.0
    %263 = vmatpush1.msra.mxu0 0.0
    %264 = vmatprep.subr.mxu0 0.0
    %265 = vmatpush1.msra.mxu0 0.0
    %266 = vmatprep.subr.mxu0 0.0
    %267 = vmatpush1.msra.mxu0 0.0
    %268 = vmatprep.subr.mxu0 0.0
    %269 = vmatpush1.msra.mxu0 0.0
    %270 = vmatprep.subr.mxu0 0.0
    %271 = vmatpush1.msra.mxu0 0.0
    %272 = vmatprep.subr.mxu0 0.0
    %273 = vmatpush1.msra.mxu0 0.0
    %274 = vmatprep.subr.mxu0 0.0
    %275 = vmatpush1.msra.mxu0 0.0
    %276 = vmatprep.subr.mxu0 0.0
    %277 = vmatpush1.msra.mxu0 0.0
    %278 = vmatprep.subr.mxu0 0.0
    %279 = vmatpush1.msra.mxu0 0.0
    %280 = vmatprep.mubr.f32.mxu0 0.0
    %281 = vmatmul.mubr.f32.gmra.mrb[0].mxu0 %v214
    %v282 = vpop.f32.mrb[0].mxu0
    %v283 = vadd.f32 %v211, %v282
    %v284 = vpop.f32.mrb[0].mxu0
    %285 = vdwg.mxu0
    %v286 = vadd.f32 %v283, %v198
    %vm287 = vcmask 123904
    %v288 = vsel %vm287, %v286, 0.0
    %289 = vadd.xlane.f32.xlu0 %v288
    %v290 = vpop.xlane.xlu0 %289
    %v291 = vrcp.pop 16.0
    %v292 = vmul.f32 %v290, %v291
    %v293 = vsub.f32 %v286, %v292
    %v294 = vmul.f32 %v293, %v293
    %v295 = vsel %vm287, %v294, 0.0
    %296 = vadd.xlane.f32.xlu0 %v295
    %v297 = vpop.xlane.xlu0 %296
    %v298 = vmul.f32 %v297, %v291
    %v299 = vadd.f32 %v298, 1e-05
    %v300 = vrsqrt.pop %v299
    %v301 = vmul.f32 %v293, %v300
    %v302 = vlaneseq
    %v303 = vshrl.u32 %v302, 7
    %v304 = vsub.s32 0, %v303
    %v305 = vrot.slane %v20, %v304
    %v306 = vmul.f32 %v301, %v305
    %v307 = vlaneseq
    %v308 = vshrl.u32 %v307, 7
    %v309 = vsub.s32 0, %v308
    %v310 = vrot.slane %v21, %v309
    %v311 = vadd.f32 %v306, %v310
    %312 = vst.msk [vmem:[#allocation2] sm:$0x3] %vm287, %v311
    // Predicated region
    $region18: #{projection_head.1} parent=1 // pred_check
      _
    $region19: #{projection_head.1} parent=1 // pred_check_branch
      %314 = sbr.rel (0) target = $region21
    $region20: #{projection_head.1} parent=1 // pred_region
      %s316 = ssub.s32 32, 32
      %317 = vsyncadd [#allocation3], %s316
      %s319 = sshll.u32 [#allocation2], 4
      %s320 = int_to_ptr.vmem [resolvable:$true] %s319
      %322 = dma.vmem_to_hbm [thread:$0]  %s320, 32, %s4, [#allocation3]
    $region21: #{projection_head.1} parent=1 // pred_fallthru
      _
    // Predicated region
    $region22: #{projection_head.1} parent=1 // pred_check
      _
    $region23: #{projection_head.1} parent=1 // pred_check_branch
      %324 = sbr.rel (0) target = $region25
    $region24: #{projection_head.1} parent=1 // pred_region
      %325 = dma.done [#allocation3], 32
    $region25: #{projection_head.1} parent=1 // pred_fallthru
      _
    %326 = vsyncpa [#allocation3], 1

</llo_original>
